<compile_context>
chip_gen: v7x
topology: tpu7x:2x2x1
jax: 0.10.0
libtpu: 0.0.40
codegen_flags: <defaults>
</compile_context>

<pallas_src>
import functools

import jax
import jax.numpy as jnp
from jax.experimental import pallas as pl
from jax.experimental.pallas import tpu as pltpu


LANE = 128  # TPU lane width (last-dim tiling unit)


def _round_up(x, m):
    return ((x + m - 1) // m) * m


def _choose_tile_b(batch):
    """Single grid step for small/medium B (no pipeline overhead on single-TC chips);
    big tiles with an even step count for large B (balances v7x's two TensorCores)."""
    if batch <= 1024:
        return batch                      # full-dim block: always legal, one step
    tile = 2048
    steps = -(-batch // tile)
    if steps % 2 == 1:                    # keep step count even for dual-TC v7x
        steps += 1
        tile = _round_up(-(-batch // steps), 8)
    return tile


def linear_head_kernel(x_ref, w1_ref, b1_ref, w2_ref, b2_ref, w3_ref, b3_ref, o_ref):
    """Whole 3-layer MLP for one batch tile, entirely in VMEM.

    x_ref : (TB, IN)      f32  (cast to bf16 in-kernel for the MXU)
    w1_ref: (IN, LAT)     bf16   b1_ref: (1, LAT)   f32
    w2_ref: (LAT, LAT)    bf16   b2_ref: (1, LAT)   f32
    w3_ref: (LAT, OUT_P)  bf16   b3_ref: (1, OUT_P) f32   (OUT_P = out_f padded to 128 lanes)
    o_ref : (TB, OUT)     f32  (true output width; narrow masked store)
    """
    neg_slope = jnp.float32(0.01)  # torch.nn.LeakyReLU default

    x = x_ref[...].astype(jnp.bfloat16)

    # Layer 1: Linear + LeakyReLU (bf16 MXU matmul, f32 accumulate / f32 VPU epilogue).
    h = jnp.dot(x, w1_ref[...], preferred_element_type=jnp.float32)
    h = h + b1_ref[...]
    h = jnp.where(h > 0, h, neg_slope * h)

    # Layer 2 (additional latent layer): Linear + LeakyReLU.
    h = jnp.dot(h.astype(jnp.bfloat16), w2_ref[...], preferred_element_type=jnp.float32)
    h = h + b2_ref[...]
    h = jnp.where(h > 0, h, neg_slope * h)

    # Output layer: Linear (no activation). The matmul runs at full 128-lane width
    # (weights lane-padded with zeros); only the real columns are stored.
    y = jnp.dot(h.astype(jnp.bfloat16), w3_ref[...], preferred_element_type=jnp.float32)
    y = y + b3_ref[...]

    out_f = o_ref.shape[-1]
    o_ref[...] = y[:, :out_f].astype(o_ref.dtype)


@functools.partial(jax.jit, static_argnames=("out_features", "tile_b"))
def _linear_head_call(x, w1, b1, w2, b2, w3, b3, *, out_features, tile_b):
    B, in_f = x.shape
    lat = w1.shape[1]
    out_p = w3.shape[1]
    grid = (pl.cdiv(B, tile_b),)  # no batch padding; trailing partial block is masked

    cost = pl.CostEstimate(
        flops=2 * B * (in_f * lat + lat * lat + lat * out_p),
        transcendentals=0,
        bytes_accessed=(
            x.size * 4
            + (w1.size + w2.size + w3.size) * 2
            + (b1.size + b2.size + b3.size) * 4
            + B * out_features * 4
        ),
    )

    in_specs = [
        pl.BlockSpec((tile_b, in_f), lambda i: (i, 0)),   # x: batch-tiled, full-dim last axis
        pl.BlockSpec((in_f, lat), lambda i: (0, 0)),      # w1 (resident)
        pl.BlockSpec((1, lat), lambda i: (0, 0)),         # b1
        pl.BlockSpec((lat, lat), lambda i: (0, 0)),       # w2
        pl.BlockSpec((1, lat), lambda i: (0, 0)),         # b2
        pl.BlockSpec((lat, out_p), lambda i: (0, 0)),     # w3 (lane-padded)
        pl.BlockSpec((1, out_p), lambda i: (0, 0)),       # b3 (lane-padded)
    ]
    out_spec = pl.BlockSpec((tile_b, out_features), lambda i: (i, 0))

    return pl.pallas_call(
        linear_head_kernel,
        out_shape=jax.ShapeDtypeStruct((B, out_features), jnp.float32),
        grid_spec=pltpu.PrefetchScalarGridSpec(
            num_scalar_prefetch=0,
            grid=grid,
            in_specs=in_specs,
            out_specs=out_spec,
        ),
        compiler_params=pltpu.CompilerParams(
            dimension_semantics=("parallel",),          # megacore / dual-TC sharding on v7x
            vmem_limit_bytes=48 * 1024 * 1024,          # headroom on v7x's 64 MiB physical VMEM
        ),
        cost_estimate=cost,
    )(x, w1, b1, w2, b2, w3, b3)


def linear_head(x, prepared):
    """x: (B, in_features) f32. prepared: output of prepare_params(). Returns (B, out_features) f32."""
    tile_b = _choose_tile_b(x.shape[0])
    return _linear_head_call(
        x,
        prepared["w1"], prepared["b1"],
        prepared["w2"], prepared["b2"],
        prepared["w3"], prepared["b3"],
        out_features=prepared["out_features"],
        tile_b=tile_b,
    )


def prepare_params(params):
    """One-time weight prep (cache the result): bf16 cast for the MXU, f32 biases,
    and zero lane-padding of the (tiny) output layer to a full 128-lane width."""
    out_f = params["w3"].shape[1]
    out_p = _round_up(out_f, LANE)
    w3 = jnp.pad(params["w3"], ((0, 0), (0, out_p - out_f)))
    b3 = jnp.pad(params["b3"].astype(jnp.float32), ((0, 0), (0, out_p - out_f)))
    return {
        "w1": params["w1"].astype(jnp.bfloat16),
        "b1": params["b1"].astype(jnp.float32),
        "w2": params["w2"].astype(jnp.bfloat16),
        "b2": params["b2"].astype(jnp.float32),
        "w3": w3.astype(jnp.bfloat16),
        "b3": b3,
        "out_features": out_f,   # plain Python int, passed as a static arg
    }


def init_params(key, in_features, latent_features, out_features):
    """Deterministic synthetic init (PyTorch-like scale), stored pre-transposed (in, out)."""
    ks = jax.random.split(key, 6)

    def uniform(k, shape, fan_in):
        bound = 1.0 / jnp.sqrt(fan_in)
        return jax.random.uniform(k, shape, jnp.float32, -bound, bound)

    return {
        "w1": uniform(ks[0], (in_features, latent_features), in_features),
        "b1": uniform(ks[1], (1, latent_features), in_features),
        "w2": uniform(ks[2], (latent_features, latent_features), latent_features),
        "b2": uniform(ks[3], (1, latent_features), latent_features),
        "w3": uniform(ks[4], (latent_features, out_features), latent_features),
        "b3": uniform(ks[5], (1, out_features), latent_features),
    }


def linear_head_ref(x, p):
    """Pure-JAX reference with the same bf16-matmul / f32-accumulate recipe as the kernel.
    NOTE: bf16 operands lose ~3 significant digits vs a true f32 nn.Linear."""
    neg = jnp.float32(0.01)

    def lin(h, w, b):
        y = jnp.dot(h.astype(jnp.bfloat16), w.astype(jnp.bfloat16),
                    preferred_element_type=jnp.float32)
        return y + b.astype(jnp.float32)

    h = lin(x, p["w1"], p["b1"])
    h = jnp.where(h > 0, h, neg * h)
    h = lin(h, p["w2"], p["b2"])
    h = jnp.where(h > 0, h, neg * h)
    return lin(h, p["w3"], p["b3"])


if __name__ == "__main__":
    key = jax.random.PRNGKey(0)
    k_x, k_p = jax.random.split(key)

    batch = 128
    in_features = 32
    latent_features = 256   # module default
    out_features = 1        # module default

    x = jax.random.normal(k_x, (batch, in_features), dtype=jnp.float32)
    raw_params = init_params(k_p, in_features, latent_features, out_features)
    params = prepare_params(raw_params)   # one-time pad/cast, cached

    out = jax.block_until_ready(linear_head(x, params))

    ref = linear_head_ref(x, raw_params)
    assert out.shape == (batch, out_features)
    assert jnp.allclose(out, ref, atol=1e-2, rtol=1e-2), "mismatch vs reference"

    print("KERNEL_OK")
</pallas_src>

<mosaic_0001>
module attributes {stable_mosaic.version = 11 : i64} {
  func.func @linear_head_kernel(%arg0: i32, %arg1: memref<128x32xf32, #tpu.memory_space<vmem>>, %arg2: memref<32x256xbf16, #tpu.memory_space<vmem>>, %arg3: memref<1x256xf32, #tpu.memory_space<vmem>>, %arg4: memref<256x256xbf16, #tpu.memory_space<vmem>>, %arg5: memref<1x256xf32, #tpu.memory_space<vmem>>, %arg6: memref<256x128xbf16, #tpu.memory_space<vmem>>, %arg7: memref<1x128xf32, #tpu.memory_space<vmem>>, %arg8: memref<128x1xf32, #tpu.memory_space<vmem>>) attributes {dimension_semantics = [#tpu.dimension_semantics<parallel>], iteration_bounds = array<i64: 1>, scalar_prefetch = 0 : i64, scratch_operands = 0 : i64, tpu.core_type = #tpu.core_type<tc>, window_params = [{transform_indices = @transform_0, window_bounds = array<i64: 128, 32>}, {pipeline_mode = #tpu.pipeline_mode<synchronous>, transform_indices = @transform_1, window_bounds = array<i64: 32, 256>}, {pipeline_mode = #tpu.pipeline_mode<synchronous>, transform_indices = @transform_2, window_bounds = array<i64: 1, 256>}, {pipeline_mode = #tpu.pipeline_mode<synchronous>, transform_indices = @transform_3, window_bounds = array<i64: 256, 256>}, {pipeline_mode = #tpu.pipeline_mode<synchronous>, transform_indices = @transform_4, window_bounds = array<i64: 1, 256>}, {pipeline_mode = #tpu.pipeline_mode<synchronous>, transform_indices = @transform_5, window_bounds = array<i64: 256, 128>}, {pipeline_mode = #tpu.pipeline_mode<synchronous>, transform_indices = @transform_6, window_bounds = array<i64: 1, 128>}, {transform_indices = @transform_7, window_bounds = array<i64: 128, 1>}]} {
    %c0 = arith.constant 0 : index
    %c0_0 = arith.constant 0 : index
    %0 = vector.load %arg1[%c0, %c0_0] : memref<128x32xf32, #tpu.memory_space<vmem>>, vector<128x32xf32>
    %1 = arith.truncf %0 : vector<128x32xf32> to vector<128x32xbf16>
    %c0_1 = arith.constant 0 : index
    %c0_2 = arith.constant 0 : index
    %2 = vector.load %arg2[%c0_1, %c0_2] : memref<32x256xbf16, #tpu.memory_space<vmem>>, vector<32x256xbf16>
    %cst = arith.constant dense<0.000000e+00> : vector<128x256xf32>
    %3 = tpu.matmul %1, %2, %cst {dimension_numbers = #tpu.dot_dimension_numbers<[1], [0], [0], [1], [0, 0, 1, 1], [], []>} : vector<128x32xbf16>, vector<32x256xbf16>, vector<128x256xf32> -> vector<128x256xf32>
    %c0_3 = arith.constant 0 : index
    %c0_4 = arith.constant 0 : index
    %4 = vector.load %arg3[%c0_3, %c0_4] : memref<1x256xf32, #tpu.memory_space<vmem>>, vector<1x256xf32>
    %5 = vector.broadcast %4 : vector<1x256xf32> to vector<128x256xf32>
    %6 = arith.addf %3, %5 : vector<128x256xf32>
    %cst_5 = arith.constant 0.000000e+00 : f32
    %7 = vector.broadcast %cst_5 : f32 to vector<128x256xf32>
    %8 = arith.cmpf ogt, %6, %7 : vector<128x256xf32>
    %cst_6 = arith.constant 0.00999999977 : f32
    %9 = vector.broadcast %cst_6 : f32 to vector<128x256xf32>
    %10 = arith.mulf %9, %6 : vector<128x256xf32>
    %11 = arith.select %8, %6, %10 : vector<128x256xi1>, vector<128x256xf32>
    %12 = arith.truncf %11 : vector<128x256xf32> to vector<128x256xbf16>
    %c0_7 = arith.constant 0 : index
    %c0_8 = arith.constant 0 : index
    %13 = vector.load %arg4[%c0_7, %c0_8] : memref<256x256xbf16, #tpu.memory_space<vmem>>, vector<256x256xbf16>
    %cst_9 = arith.constant dense<0.000000e+00> : vector<128x256xf32>
    %14 = tpu.matmul %12, %13, %cst_9 {dimension_numbers = #tpu.dot_dimension_numbers<[1], [0], [0], [1], [0, 0, 1, 1], [], []>} : vector<128x256xbf16>, vector<256x256xbf16>, vector<128x256xf32> -> vector<128x256xf32>
    %c0_10 = arith.constant 0 : index
    %c0_11 = arith.constant 0 : index
    %15 = vector.load %arg5[%c0_10, %c0_11] : memref<1x256xf32, #tpu.memory_space<vmem>>, vector<1x256xf32>
    %16 = vector.broadcast %15 : vector<1x256xf32> to vector<128x256xf32>
    %17 = arith.addf %14, %16 : vector<128x256xf32>
    %cst_12 = arith.constant 0.000000e+00 : f32
    %18 = vector.broadcast %cst_12 : f32 to vector<128x256xf32>
    %19 = arith.cmpf ogt, %17, %18 : vector<128x256xf32>
    %cst_13 = arith.constant 0.00999999977 : f32
    %20 = vector.broadcast %cst_13 : f32 to vector<128x256xf32>
    %21 = arith.mulf %20, %17 : vector<128x256xf32>
    %22 = arith.select %19, %17, %21 : vector<128x256xi1>, vector<128x256xf32>
    %23 = arith.truncf %22 : vector<128x256xf32> to vector<128x256xbf16>
    %c0_14 = arith.constant 0 : index
    %c0_15 = arith.constant 0 : index
    %24 = vector.load %arg6[%c0_14, %c0_15] : memref<256x128xbf16, #tpu.memory_space<vmem>>, vector<256x128xbf16>
    %cst_16 = arith.constant dense<0.000000e+00> : vector<128x128xf32>
    %25 = tpu.matmul %23, %24, %cst_16 {dimension_numbers = #tpu.dot_dimension_numbers<[1], [0], [0], [1], [0, 0, 1, 1], [], []>} : vector<128x256xbf16>, vector<256x128xbf16>, vector<128x128xf32> -> vector<128x128xf32>
    %c0_17 = arith.constant 0 : index
    %c0_18 = arith.constant 0 : index
    %26 = vector.load %arg7[%c0_17, %c0_18] : memref<1x128xf32, #tpu.memory_space<vmem>>, vector<1x128xf32>
    %27 = vector.broadcast %26 : vector<1x128xf32> to vector<128x128xf32>
    %28 = arith.addf %25, %27 : vector<128x128xf32>
    %29 = vector.extract_strided_slice %28 {offsets = [0, 0], sizes = [128, 1], strides = [1, 1]} : vector<128x128xf32> to vector<128x1xf32>
    %c0_19 = arith.constant 0 : index
    %c0_20 = arith.constant 0 : index
    %30 = vector.load %arg8[%c0_19, %c0_20] : memref<128x1xf32, #tpu.memory_space<vmem>>, vector<128x1xf32>
    tpu.vector_store %arg8[%c0_19, %c0_20], %29 {strides = array<i32>} : memref<128x1xf32, #tpu.memory_space<vmem>>, vector<128x1xf32>,
    return
  }
  func.func @transform_0(%arg0: i32) -> (i32, i32) {
    %c0_i32 = arith.constant 0 : i32
    %c0_i32_0 = arith.constant 0 : i32
    return %arg0, %c0_i32 : i32, i32
  }
  func.func @transform_1(%arg0: i32) -> (i32, i32) {
    %c0_i32 = arith.constant 0 : i32
    %c0_i32_0 = arith.constant 0 : i32
    %c0_i32_1 = arith.constant 0 : i32
    return %c0_i32, %c0_i32_0 : i32, i32
  }
  func.func @transform_2(%arg0: i32) -> (i32, i32) {
    %c0_i32 = arith.constant 0 : i32
    %c0_i32_0 = arith.constant 0 : i32
    %c0_i32_1 = arith.constant 0 : i32
    return %c0_i32, %c0_i32_0 : i32, i32
  }
  func.func @transform_3(%arg0: i32) -> (i32, i32) {
    %c0_i32 = arith.constant 0 : i32
    %c0_i32_0 = arith.constant 0 : i32
    %c0_i32_1 = arith.constant 0 : i32
    return %c0_i32, %c0_i32_0 : i32, i32
  }
  func.func @transform_4(%arg0: i32) -> (i32, i32) {
    %c0_i32 = arith.constant 0 : i32
    %c0_i32_0 = arith.constant 0 : i32
    %c0_i32_1 = arith.constant 0 : i32
    return %c0_i32, %c0_i32_0 : i32, i32
  }
  func.func @transform_5(%arg0: i32) -> (i32, i32) {
    %c0_i32 = arith.constant 0 : i32
    %c0_i32_0 = arith.constant 0 : i32
    %c0_i32_1 = arith.constant 0 : i32
    return %c0_i32, %c0_i32_0 : i32, i32
  }
  func.func @transform_6(%arg0: i32) -> (i32, i32) {
    %c0_i32 = arith.constant 0 : i32
    %c0_i32_0 = arith.constant 0 : i32
    %c0_i32_1 = arith.constant 0 : i32
    return %c0_i32, %c0_i32_0 : i32, i32
  }
  func.func @transform_7(%arg0: i32) -> (i32, i32) {
    %c0_i32 = arith.constant 0 : i32
    %c0_i32_0 = arith.constant 0 : i32
    return %arg0, %c0_i32 : i32, i32
  }
}

</mosaic_0001>

<llo_original>
// kernel: _linear_head_call.1
$region0: #{_linear_head_call.1}
  #allocation0 [shape = 'u32[]', space=smem, size = 0x4, offset = 0x4, fixed_abs, tag = 'smem constant byte address 0x4 - core index']
  #allocation1 [shape = 'u32[144,128]{1,0:T(1,128)}', space=vmem, size = 0x12000, scoped, tag = 'internal scratch']
  %s0 = inlined_call_operand.vmem [shape: f32[128,32], index: 0, kind: input, shape index: {}]
  %s1 = inlined_call_operand.vmem [shape: bf16[32,256], index: 1, kind: input, shape index: {}]
  %s2 = inlined_call_operand.vmem [shape: f32[1,256], index: 2, kind: input, shape index: {}]
  %s3 = inlined_call_operand.hbm [shape: bf16[256,256], index: 3, kind: input, shape index: {}]
  %s4 = inlined_call_operand.vmem [shape: f32[1,256], index: 4, kind: input, shape index: {}]
  %s5 = inlined_call_operand.vmem [shape: bf16[256,128], index: 5, kind: input, shape index: {}]
  %s6 = inlined_call_operand.vmem [shape: f32[1,128], index: 6, kind: input, shape index: {}]
  %s7 = inlined_call_operand.vmem [shape: f32[128,1], index: 7, kind: output, shape index: {}]
  %s8 = sld [smem:[#allocation0]]
  $region42: #{_linear_head_call.1} parent=0
    _
  %s10 = ssub.s32 1, %s8
  %s11 = scalar_select 0, %s10, %s8
  $region1: #{_linear_head_call.1} parent=0
    #allocation2 [shape = 'u8[131072]{0}', space=vmem, size = 0x20000, scoped, tag = 'input window, operand 3, single buffered']
    #allocation3 [shape = 's32[1]{0}', space=sflag, size = 0x4, scoped, tag = 'scoped memory for _linear_head_call.1']
    %12 = vsyncpa [#allocation3], 0
    // Predicated region
    $region2: #{_linear_head_call.1} parent=1 // pred_check
      _
    $region3: #{_linear_head_call.1} parent=1 // pred_check_branch
      %14 = sbr.rel (0) target = $region5
    $region4: #{_linear_head_call.1} parent=1 // pred_region
      _
    $region5: #{_linear_head_call.1} parent=1 // pred_fallthru
      _
    // Predicated region
    $region6: #{_linear_head_call.1} parent=1 // pred_check
      _
    $region7: #{_linear_head_call.1} parent=1 // pred_check_branch
      %16 = sbr.rel (0) target = $region9
    $region8: #{_linear_head_call.1} parent=1 // pred_region
      _
    $region9: #{_linear_head_call.1} parent=1 // pred_fallthru
      _
    // Predicated region
    $region10: #{_linear_head_call.1} parent=1 // pred_check
      _
    $region11: #{_linear_head_call.1} parent=1 // pred_check_branch
      %18 = sbr.rel (0) target = $region13
    $region12: #{_linear_head_call.1} parent=1 // pred_region
      _
    $region13: #{_linear_head_call.1} parent=1 // pred_fallthru
      _
    // Predicated region
    $region14: #{_linear_head_call.1} parent=1 // pred_check
      _
    $region15: #{_linear_head_call.1} parent=1 // pred_check_branch
      %20 = sbr.rel (0) target = $region17
    $region16: #{_linear_head_call.1} parent=1 // pred_region
      %s22 = ssub.s32 4096, 4096
      %23 = vsyncadd [#allocation3], %s22
      %s24 = sshll.u32 [#allocation2], 4
      %s25 = int_to_ptr.vmem [resolvable:$true] %s24
      %30 = dma.hbm_to_vmem [thread:$0]  %s3, 4096, %s25, [#allocation3], 128, 128, 8
    $region17: #{_linear_head_call.1} parent=1 // pred_fallthru
      _
    // Predicated region
    $region18: #{_linear_head_call.1} parent=1 // pred_check
      _
    $region19: #{_linear_head_call.1} parent=1 // pred_check_branch
      %32 = sbr.rel (0) target = $region21
    $region20: #{_linear_head_call.1} parent=1 // pred_region
      _
    $region21: #{_linear_head_call.1} parent=1 // pred_fallthru
      _
    // Predicated region
    $region22: #{_linear_head_call.1} parent=1 // pred_check
      _
    $region23: #{_linear_head_call.1} parent=1 // pred_check_branch
      %34 = sbr.rel (0) target = $region25
    $region24: #{_linear_head_call.1} parent=1 // pred_region
      _
    $region25: #{_linear_head_call.1} parent=1 // pred_fallthru
      _
    // Predicated region
    $region26: #{_linear_head_call.1} parent=1 // pred_check
      _
    $region27: #{_linear_head_call.1} parent=1 // pred_check_branch
      %36 = sbr.rel (0) target = $region29
    $region28: #{_linear_head_call.1} parent=1 // pred_region
      _
    $region29: #{_linear_head_call.1} parent=1 // pred_fallthru
      _
    // Predicated region
    $region30: #{_linear_head_call.1} parent=1 // pred_check
      _
    $region31: #{_linear_head_call.1} parent=1 // pred_check_branch
      %38 = sbr.rel (0) target = $region33
    $region32: #{_linear_head_call.1} parent=1 // pred_region
      %39 = dma.done [#allocation3], 4096
    $region33: #{_linear_head_call.1} parent=1 // pred_fallthru
      _
    %v41 = vld [vmem:[%s0] sm:$0xff]
    %v42 = vld [vmem:[%s0 + $0x8] sm:$0xff]
    %v43 = vld [vmem:[%s0 + $0x10] sm:$0xff]
    %v44 = vld [vmem:[%s0 + $0x18] sm:$0xff]
    %v45 = vld [vmem:[%s0 + $0x20] sm:$0xff]
    %v46 = vld [vmem:[%s0 + $0x28] sm:$0xff]
    %v47 = vld [vmem:[%s0 + $0x30] sm:$0xff]
    %v48 = vld [vmem:[%s0 + $0x38] sm:$0xff]
    %v49 = vld [vmem:[%s0 + $0x40] sm:$0xff]
    %v50 = vld [vmem:[%s0 + $0x48] sm:$0xff]
    %v51 = vld [vmem:[%s0 + $0x50] sm:$0xff]
    %v52 = vld [vmem:[%s0 + $0x58] sm:$0xff]
    %v53 = vld [vmem:[%s0 + $0x60] sm:$0xff]
    %v54 = vld [vmem:[%s0 + $0x68] sm:$0xff]
    %v55 = vld [vmem:[%s0 + $0x70] sm:$0xff]
    %v56 = vld [vmem:[%s0 + $0x78] sm:$0xff]
    %v57 = vpack.c.bf16 %v42, %v41
    %v58 = vpack.c.bf16 %v44, %v43
    %v59 = vpack.c.bf16 %v46, %v45
    %v60 = vpack.c.bf16 %v48, %v47
    %v61 = vpack.c.bf16 %v50, %v49
    %v62 = vpack.c.bf16 %v52, %v51
    %v63 = vpack.c.bf16 %v54, %v53
    %v64 = vpack.c.bf16 %v56, %v55
    %v65 = vld [vmem:[%s1] sm:$0xff]
    %v66 = vld [vmem:[%s1 + $0x8] sm:$0xff]
    %v67 = vld [vmem:[%s1 + $0x10] sm:$0xff]
    %v68 = vld [vmem:[%s1 + $0x18] sm:$0xff]
    %v69 = vld [vmem:[%s2] sm:$0x3]
    %v71 = vlaneseq
    %v72 = vshrl.u32 %v71, 7
    %v73 = vsub.s32 0, %v72
    %v74 = vrot.slane %v69, %v73
    %v75 = vlaneseq
    %v76 = vshrl.u32 %v75, 7
    %v77 = vsub.s32 1, %v76
    %v78 = vrot.slane %v69, %v77
    %v85 = vunpack.c.l.b16 %v65
    %v86 = vunpack.c.h.b16 %v65
    %v87 = vunpack.c.l.b16 %v66
    %v88 = vunpack.c.h.b16 %v66
    %v89 = vunpack.c.l.b16 %v67
    %v90 = vunpack.c.h.b16 %v67
    %v91 = vunpack.c.l.b16 %v68
    %v92 = vunpack.c.h.b16 %v68
    %v93 = vpack.c.b16 %v87, %v85
    %v94 = vpack.c.b16 %v88, %v86
    %v95 = vpack.c.b16 %v91, %v89
    %v96 = vpack.c.b16 %v92, %v90
    %vm101 = vcmask 261120
    %v103 = vsel %vm101, %v57, 0
    %v106 = vsel %vm101, %v58, 0
    %v109 = vsel %vm101, %v59, 0
    %v112 = vsel %vm101, %v60, 0
    %v115 = vsel %vm101, %v61, 0
    %v118 = vsel %vm101, %v62, 0
    %v121 = vsel %vm101, %v63, 0
    %v124 = vsel %vm101, %v64, 0
    %126 = vmatprep.subr.bf16.mxu0 %v94
    %127 = vmatpush1.bf16.msra.mxu0 %v93
    %128 = vmatprep.subr.bf16.mxu0 %v96
    %129 = vmatpush1.bf16.msra.mxu0 %v95
    %130 = vmatprep.subr.bf16.mxu0 0
    %131 = vmatpush1.bf16.msra.mxu0 0
    %132 = vmatprep.subr.bf16.mxu0 0
    %133 = vmatpush1.bf16.msra.mxu0 0
    %134 = vmatprep.subr.bf16.mxu0 0
    %135 = vmatpush1.bf16.msra.mxu0 0
    %136 = vmatprep.subr.bf16.mxu0 0
    %137 = vmatpush1.bf16.msra.mxu0 0
    %138 = vmatprep.subr.bf16.mxu0 0
    %139 = vmatpush1.bf16.msra.mxu0 0
    %140 = vmatprep.subr.bf16.mxu0 0
    %141 = vmatpush1.bf16.msra.mxu0 0
    %142 = vmatprep.subr.bf16.mxu0 0
    %143 = vmatpush1.bf16.msra.mxu0 0
    %144 = vmatprep.subr.bf16.mxu0 0
    %145 = vmatpush1.bf16.msra.mxu0 0
    %146 = vmatprep.subr.bf16.mxu0 0
    %147 = vmatpush1.bf16.msra.mxu0 0
    %148 = vmatprep.subr.bf16.mxu0 0
    %149 = vmatpush1.bf16.msra.mxu0 0
    %150 = vmatprep.subr.bf16.mxu0 0
    %151 = vmatpush1.bf16.msra.mxu0 0
    %152 = vmatprep.subr.bf16.mxu0 0
    %153 = vmatpush1.bf16.msra.mxu0 0
    %154 = vmatprep.subr.bf16.mxu0 0
    %155 = vmatpush1.bf16.msra.mxu0 0
    %156 = vmatprep.subr.bf16.mxu0 0
    %157 = vmatpush1.bf16.msra.mxu0 0
    %158 = vmatprep.mubr.bf16.mxu0 0
    %159 = vmatmul.mubr.bf16.gmra.mrb[0].mxu0 %v103
    %v160 = vpop.f32.mrb[0].mxu0
    %v161 = vadd.f32 %v74, %v160
    %v162 = vpop.f32.mrb[0].mxu0
    %v163 = vadd.f32 %v78, %v162
    %v164 = vpop.f32.mrb[0].mxu0
    %v165 = vadd.f32 %v74, %v164
    %v166 = vpop.f32.mrb[0].mxu0
    %v167 = vadd.f32 %v78, %v166
    %168 = vmatprep.mubr.bf16.mxu0 0
    %169 = vmatmul.mubr.bf16.gmra.mrb[0].mxu0 %v106
    %v170 = vpop.f32.mrb[0].mxu0
    %v171 = vadd.f32 %v74, %v170
    %v172 = vpop.f32.mrb[0].mxu0
    %v173 = vadd.f32 %v78, %v172
    %v174 = vpop.f32.mrb[0].mxu0
    %v175 = vadd.f32 %v74, %v174
    %v176 = vpop.f32.mrb[0].mxu0
    %v177 = vadd.f32 %v78, %v176
    %178 = vmatprep.mubr.bf16.mxu0 0
    %179 = vmatmul.mubr.bf16.gmra.mrb[0].mxu0 %v109
    %v180 = vpop.f32.mrb[0].mxu0
    %v181 = vadd.f32 %v74, %v180
    %v182 = vpop.f32.mrb[0].mxu0
    %v183 = vadd.f32 %v78, %v182
    %v184 = vpop.f32.mrb[0].mxu0
    %v185 = vadd.f32 %v74, %v184
    %v186 = vpop.f32.mrb[0].mxu0
    %v187 = vadd.f32 %v78, %v186
    %188 = vmatprep.mubr.bf16.mxu0 0
    %189 = vmatmul.mubr.bf16.gmra.mrb[0].mxu0 %v112
    %v190 = vpop.f32.mrb[0].mxu0
    %v191 = vadd.f32 %v74, %v190
    %v192 = vpop.f32.mrb[0].mxu0
    %v193 = vadd.f32 %v78, %v192
    %v194 = vpop.f32.mrb[0].mxu0
    %v195 = vadd.f32 %v74, %v194
    %v196 = vpop.f32.mrb[0].mxu0
    %v197 = vadd.f32 %v78, %v196
    %198 = vmatprep.mubr.bf16.mxu0 0
    %199 = vmatmul.mubr.bf16.gmra.mrb[0].mxu0 %v115
    %v200 = vpop.f32.mrb[0].mxu0
    %v201 = vadd.f32 %v74, %v200
    %v202 = vpop.f32.mrb[0].mxu0
    %v203 = vadd.f32 %v78, %v202
    %v204 = vpop.f32.mrb[0].mxu0
    %v205 = vadd.f32 %v74, %v204
    %v206 = vpop.f32.mrb[0].mxu0
    %v207 = vadd.f32 %v78, %v206
    %208 = vmatprep.mubr.bf16.mxu0 0
    %209 = vmatmul.mubr.bf16.gmra.mrb[0].mxu0 %v118
    %v210 = vpop.f32.mrb[0].mxu0
    %v211 = vadd.f32 %v74, %v210
    %v212 = vpop.f32.mrb[0].mxu0
    %v213 = vadd.f32 %v78, %v212
    %v214 = vpop.f32.mrb[0].mxu0
    %v215 = vadd.f32 %v74, %v214
    %v216 = vpop.f32.mrb[0].mxu0
    %v217 = vadd.f32 %v78, %v216
    %218 = vmatprep.mubr.bf16.mxu0 0
    %219 = vmatmul.mubr.bf16.gmra.mrb[0].mxu0 %v121
    %v220 = vpop.f32.mrb[0].mxu0
    %v221 = vadd.f32 %v74, %v220
    %v222 = vpop.f32.mrb[0].mxu0
    %v223 = vadd.f32 %v78, %v222
    %v224 = vpop.f32.mrb[0].mxu0
    %v225 = vadd.f32 %v74, %v224
    %v226 = vpop.f32.mrb[0].mxu0
    %v227 = vadd.f32 %v78, %v226
    %228 = vmatprep.mubr.bf16.mxu0 0
    %229 = vmatmul.mubr.bf16.gmra.mrb[0].mxu0 %v124
    %v230 = vpop.f32.mrb[0].mxu0
    %v231 = vadd.f32 %v74, %v230
    %v232 = vpop.f32.mrb[0].mxu0
    %v233 = vadd.f32 %v78, %v232
    %v234 = vpop.f32.mrb[0].mxu0
    %v235 = vadd.f32 %v74, %v234
    %v236 = vpop.f32.mrb[0].mxu0
    %v237 = vadd.f32 %v78, %v236
    %238 = vdwg.mxu0
    %vm239 = vcmp.gt.f32.partialorder %v161, 0.0
    %vm240 = vcmp.gt.f32.partialorder %v163, 0.0
    %vm241 = vcmp.gt.f32.partialorder %v165, 0.0
    %vm242 = vcmp.gt.f32.partialorder %v167, 0.0
    %vm243 = vcmp.gt.f32.partialorder %v171, 0.0
    %vm244 = vcmp.gt.f32.partialorder %v173, 0.0
    %vm245 = vcmp.gt.f32.partialorder %v175, 0.0
    %vm246 = vcmp.gt.f32.partialorder %v177, 0.0
    %vm247 = vcmp.gt.f32.partialorder %v181, 0.0
    %vm248 = vcmp.gt.f32.partialorder %v183, 0.0
    %vm249 = vcmp.gt.f32.partialorder %v185, 0.0
    %vm250 = vcmp.gt.f32.partialorder %v187, 0.0
    %vm251 = vcmp.gt.f32.partialorder %v191, 0.0
    %vm252 = vcmp.gt.f32.partialorder %v193, 0.0
    %vm253 = vcmp.gt.f32.partialorder %v195, 0.0
    %vm254 = vcmp.gt.f32.partialorder %v197, 0.0
    %vm255 = vcmp.gt.f32.partialorder %v201, 0.0
    %vm256 = vcmp.gt.f32.partialorder %v203, 0.0
    %vm257 = vcmp.gt.f32.partialorder %v205, 0.0
    %vm258 = vcmp.gt.f32.partialorder %v207, 0.0
    %vm259 = vcmp.gt.f32.partialorder %v211, 0.0
    %vm260 = vcmp.gt.f32.partialorder %v213, 0.0
    %vm261 = vcmp.gt.f32.partialorder %v215, 0.0
    %vm262 = vcmp.gt.f32.partialorder %v217, 0.0
    %vm263 = vcmp.gt.f32.partialorder %v221, 0.0
    %vm264 = vcmp.gt.f32.partialorder %v223, 0.0
    %vm265 = vcmp.gt.f32.partialorder %v225, 0.0
    %vm266 = vcmp.gt.f32.partialorder %v227, 0.0
    %vm267 = vcmp.gt.f32.partialorder %v231, 0.0
    %vm268 = vcmp.gt.f32.partialorder %v233, 0.0
    %vm269 = vcmp.gt.f32.partialorder %v235, 0.0
    %vm270 = vcmp.gt.f32.partialorder %v237, 0.0
    %v271 = vmul.f32 %v161, 0.01
    %v272 = vmul.f32 %v163, 0.01
    %v273 = vmul.f32 %v165, 0.01
    %v274 = vmul.f32 %v167, 0.01
    %v275 = vmul.f32 %v171, 0.01
    %v276 = vmul.f32 %v173, 0.01
    %v277 = vmul.f32 %v175, 0.01
    %v278 = vmul.f32 %v177, 0.01
    %v279 = vmul.f32 %v181, 0.01
    %v280 = vmul.f32 %v183, 0.01
    %v281 = vmul.f32 %v185, 0.01
    %v282 = vmul.f32 %v187, 0.01
    %v283 = vmul.f32 %v191, 0.01
    %v284 = vmul.f32 %v193, 0.01
    %v285 = vmul.f32 %v195, 0.01
    %v286 = vmul.f32 %v197, 0.01
    %v287 = vmul.f32 %v201, 0.01
    %v288 = vmul.f32 %v203, 0.01
    %v289 = vmul.f32 %v205, 0.01
    %v290 = vmul.f32 %v207, 0.01
    %v291 = vmul.f32 %v211, 0.01
    %v292 = vmul.f32 %v213, 0.01
    %v293 = vmul.f32 %v215, 0.01
    %v294 = vmul.f32 %v217, 0.01
    %v295 = vmul.f32 %v221, 0.01
    %v296 = vmul.f32 %v223, 0.01
    %v297 = vmul.f32 %v225, 0.01
    %v298 = vmul.f32 %v227, 0.01
    %v299 = vmul.f32 %v231, 0.01
    %v300 = vmul.f32 %v233, 0.01
    %v301 = vmul.f32 %v235, 0.01
    %v302 = vmul.f32 %v237, 0.01
    %v303 = vsel %vm239, %v161, %v271
    %v304 = vsel %vm240, %v163, %v272
    %v305 = vsel %vm241, %v165, %v273
    %v306 = vsel %vm242, %v167, %v274
    %v307 = vsel %vm243, %v171, %v275
    %v308 = vsel %vm244, %v173, %v276
    %v309 = vsel %vm245, %v175, %v277
    %v310 = vsel %vm246, %v177, %v278
    %v311 = vsel %vm247, %v181, %v279
    %v312 = vsel %vm248, %v183, %v280
    %v313 = vsel %vm249, %v185, %v281
    %v314 = vsel %vm250, %v187, %v282
    %v315 = vsel %vm251, %v191, %v283
    %v316 = vsel %vm252, %v193, %v284
    %v317 = vsel %vm253, %v195, %v285
    %v318 = vsel %vm254, %v197, %v286
    %v319 = vsel %vm255, %v201, %v287
    %v320 = vsel %vm256, %v203, %v288
    %v321 = vsel %vm257, %v205, %v289
    %v322 = vsel %vm258, %v207, %v290
    %v323 = vsel %vm259, %v211, %v291
    %v324 = vsel %vm260, %v213, %v292
    %v325 = vsel %vm261, %v215, %v293
    %v326 = vsel %vm262, %v217, %v294
    %v327 = vsel %vm263, %v221, %v295
    %v328 = vsel %vm264, %v223, %v296
    %v329 = vsel %vm265, %v225, %v297
    %v330 = vsel %vm266, %v227, %v298
    %v331 = vsel %vm267, %v231, %v299
    %v332 = vsel %vm268, %v233, %v300
    %v333 = vsel %vm269, %v235, %v301
    %v334 = vsel %vm270, %v237, %v302
    %v335 = vpack.c.bf16 %v305, %v303
    %v336 = vpack.c.bf16 %v306, %v304
    %v337 = vpack.c.bf16 %v309, %v307
    %v338 = vpack.c.bf16 %v310, %v308
    %v339 = vpack.c.bf16 %v313, %v311
    %v340 = vpack.c.bf16 %v314, %v312
    %v341 = vpack.c.bf16 %v317, %v315
    %v342 = vpack.c.bf16 %v318, %v316
    %v343 = vpack.c.bf16 %v321, %v319
    %v344 = vpack.c.bf16 %v322, %v320
    %v345 = vpack.c.bf16 %v325, %v323
    %v346 = vpack.c.bf16 %v326, %v324
    %v347 = vpack.c.bf16 %v329, %v327
    %v348 = vpack.c.bf16 %v330, %v328
    %v349 = vpack.c.bf16 %v333, %v331
    %v350 = vpack.c.bf16 %v334, %v332
    %v351 = vld [vmem:[#allocation2] sm:$0xff]
    %v352 = vld [vmem:[#allocation2 + $0x8] sm:$0xff]
    %v353 = vld [vmem:[#allocation2 + $0x10] sm:$0xff]
    %v354 = vld [vmem:[#allocation2 + $0x18] sm:$0xff]
    %v355 = vld [vmem:[#allocation2 + $0x20] sm:$0xff]
    %v356 = vld [vmem:[#allocation2 + $0x28] sm:$0xff]
    %v357 = vld [vmem:[#allocation2 + $0x30] sm:$0xff]
    %v358 = vld [vmem:[#allocation2 + $0x38] sm:$0xff]
    %v359 = vld [vmem:[#allocation2 + $0x40] sm:$0xff]
    %v360 = vld [vmem:[#allocation2 + $0x48] sm:$0xff]
    %v361 = vld [vmem:[#allocation2 + $0x50] sm:$0xff]
    %v362 = vld [vmem:[#allocation2 + $0x58] sm:$0xff]
    %v363 = vld [vmem:[#allocation2 + $0x60] sm:$0xff]
    %v364 = vld [vmem:[#allocation2 + $0x68] sm:$0xff]
    %v365 = vld [vmem:[#allocation2 + $0x70] sm:$0xff]
    %v366 = vld [vmem:[#allocation2 + $0x78] sm:$0xff]
    %v367 = vld [vmem:[#allocation2 + $0x80] sm:$0xff]
    %v368 = vld [vmem:[#allocation2 + $0x88] sm:$0xff]
    %v369 = vld [vmem:[#allocation2 + $0x90] sm:$0xff]
    %v370 = vld [vmem:[#allocation2 + $0x98] sm:$0xff]
    %v371 = vld [vmem:[#allocation2 + $0xa0] sm:$0xff]
    %v372 = vld [vmem:[#allocation2 + $0xa8] sm:$0xff]
    %v373 = vld [vmem:[#allocation2 + $0xb0] sm:$0xff]
    %v374 = vld [vmem:[#allocation2 + $0xb8] sm:$0xff]
    %v375 = vld [vmem:[#allocation2 + $0xc0] sm:$0xff]
    %v376 = vld [vmem:[#allocation2 + $0xc8] sm:$0xff]
    %v377 = vld [vmem:[#allocation2 + $0xd0] sm:$0xff]
    %v378 = vld [vmem:[#allocation2 + $0xd8] sm:$0xff]
    %v379 = vld [vmem:[#allocation2 + $0xe0] sm:$0xff]
    %v380 = vld [vmem:[#allocation2 + $0xe8] sm:$0xff]
    %v381 = vld [vmem:[#allocation2 + $0xf0] sm:$0xff]
    %v382 = vld [vmem:[#allocation2 + $0xf8] sm:$0xff]
    %v383 = vld [vmem:[%s4] sm:$0x3]
    %v385 = vlaneseq
    %v386 = vshrl.u32 %v385, 7
    %v387 = vsub.s32 0, %v386
    %v388 = vrot.slane %v383, %v387
    %v389 = vlaneseq
    %v390 = vshrl.u32 %v389, 7
    %v391 = vsub.s32 1, %v390
    %v392 = vrot.slane %v383, %v391
    %v427 = vunpack.c.l.b16 %v351
    %v428 = vunpack.c.h.b16 %v351
    %v429 = vunpack.c.l.b16 %v352
    %v430 = vunpack.c.h.b16 %v352
    %v431 = vunpack.c.l.b16 %v353
    %v432 = vunpack.c.h.b16 %v353
    %v433 = vunpack.c.l.b16 %v354
    %v434 = vunpack.c.h.b16 %v354
    %v435 = vunpack.c.l.b16 %v355
    %v436 = vunpack.c.h.b16 %v355
    %v437 = vunpack.c.l.b16 %v356
    %v438 = vunpack.c.h.b16 %v356
    %v439 = vunpack.c.l.b16 %v357
    %v440 = vunpack.c.h.b16 %v357
    %v441 = vunpack.c.l.b16 %v358
    %v442 = vunpack.c.h.b16 %v358
    %v443 = vunpack.c.l.b16 %v359
    %v444 = vunpack.c.h.b16 %v359
    %v445 = vunpack.c.l.b16 %v360
    %v446 = vunpack.c.h.b16 %v360
    %v447 = vunpack.c.l.b16 %v361
    %v448 = vunpack.c.h.b16 %v361
    %v449 = vunpack.c.l.b16 %v362
    %v450 = vunpack.c.h.b16 %v362
    %v451 = vunpack.c.l.b16 %v363
    %v452 = vunpack.c.h.b16 %v363
    %v453 = vunpack.c.l.b16 %v364
    %v454 = vunpack.c.h.b16 %v364
    %v455 = vunpack.c.l.b16 %v365
    %v456 = vunpack.c.h.b16 %v365
    %v457 = vunpack.c.l.b16 %v366
    %v458 = vunpack.c.h.b16 %v366
    %v459 = vunpack.c.l.b16 %v367
    %v460 = vunpack.c.h.b16 %v367
    %v461 = vunpack.c.l.b16 %v368
    %v462 = vunpack.c.h.b16 %v368
    %v463 = vunpack.c.l.b16 %v369
    %v464 = vunpack.c.h.b16 %v369
    %v465 = vunpack.c.l.b16 %v370
    %v466 = vunpack.c.h.b16 %v370
    %v467 = vunpack.c.l.b16 %v371
    %v468 = vunpack.c.h.b16 %v371
    %v469 = vunpack.c.l.b16 %v372
    %v470 = vunpack.c.h.b16 %v372
    %v471 = vunpack.c.l.b16 %v373
    %v472 = vunpack.c.h.b16 %v373
    %v473 = vunpack.c.l.b16 %v374
    %v474 = vunpack.c.h.b16 %v374
    %v475 = vunpack.c.l.b16 %v375
    %v476 = vunpack.c.h.b16 %v375
    %v477 = vunpack.c.l.b16 %v376
    %v478 = vunpack.c.h.b16 %v376
    %v479 = vunpack.c.l.b16 %v377
    %v480 = vunpack.c.h.b16 %v377
    %v481 = vunpack.c.l.b16 %v378
    %v482 = vunpack.c.h.b16 %v378
    %v483 = vunpack.c.l.b16 %v379
    %v484 = vunpack.c.h.b16 %v379
    %v485 = vunpack.c.l.b16 %v380
    %v486 = vunpack.c.h.b16 %v380
    %v487 = vunpack.c.l.b16 %v381
    %v488 = vunpack.c.h.b16 %v381
    %v489 = vunpack.c.l.b16 %v382
    %v490 = vunpack.c.h.b16 %v382
    %v491 = vpack.c.b16 %v429, %v427
    %v492 = vpack.c.b16 %v430, %v428
    %v493 = vpack.c.b16 %v433, %v431
    %v494 = vpack.c.b16 %v434, %v432
    %v495 = vpack.c.b16 %v437, %v435
    %v496 = vpack.c.b16 %v438, %v436
    %v497 = vpack.c.b16 %v441, %v439
    %v498 = vpack.c.b16 %v442, %v440
    %v499 = vpack.c.b16 %v445, %v443
    %v500 = vpack.c.b16 %v446, %v444
    %v501 = vpack.c.b16 %v449, %v447
    %v502 = vpack.c.b16 %v450, %v448
    %v503 = vpack.c.b16 %v453, %v451
    %v504 = vpack.c.b16 %v454, %v452
    %v505 = vpack.c.b16 %v457, %v455
    %v506 = vpack.c.b16 %v458, %v456
    %v507 = vpack.c.b16 %v461, %v459
    %v508 = vpack.c.b16 %v462, %v460
    %v509 = vpack.c.b16 %v465, %v463
    %v510 = vpack.c.b16 %v466, %v464
    %v511 = vpack.c.b16 %v469, %v467
    %v512 = vpack.c.b16 %v470, %v468
    %v513 = vpack.c.b16 %v473, %v471
    %v514 = vpack.c.b16 %v474, %v472
    %v515 = vpack.c.b16 %v477, %v475
    %v516 = vpack.c.b16 %v478, %v476
    %v517 = vpack.c.b16 %v481, %v479
    %v518 = vpack.c.b16 %v482, %v480
    %v519 = vpack.c.b16 %v485, %v483
    %v520 = vpack.c.b16 %v486, %v484
    %v521 = vpack.c.b16 %v489, %v487
    %v522 = vpack.c.b16 %v490, %v488
    %555 = vmatprep.subr.bf16.mxu0 %v492
    %556 = vmatpush1.bf16.msra.mxu0 %v491
    %557 = vmatprep.subr.bf16.mxu0 %v494
    %558 = vmatpush1.bf16.msra.mxu0 %v493
    %559 = vmatprep.subr.bf16.mxu0 %v496
    %560 = vmatpush1.bf16.msra.mxu0 %v495
    %561 = vmatprep.subr.bf16.mxu0 %v498
    %562 = vmatpush1.bf16.msra.mxu0 %v497
    %563 = vmatprep.subr.bf16.mxu0 %v500
    %564 = vmatpush1.bf16.msra.mxu0 %v499
    %565 = vmatprep.subr.bf16.mxu0 %v502
    %566 = vmatpush1.bf16.msra.mxu0 %v501
    %567 = vmatprep.subr.bf16.mxu0 %v504
    %568 = vmatpush1.bf16.msra.mxu0 %v503
    %569 = vmatprep.subr.bf16.mxu0 %v506
    %570 = vmatpush1.bf16.msra.mxu0 %v505
    %571 = vmatprep.subr.bf16.mxu0 %v508
    %572 = vmatpush1.bf16.msra.mxu0 %v507
    %573 = vmatprep.subr.bf16.mxu0 %v510
    %574 = vmatpush1.bf16.msra.mxu0 %v509
    %575 = vmatprep.subr.bf16.mxu0 %v512
    %576 = vmatpush1.bf16.msra.mxu0 %v511
    %577 = vmatprep.subr.bf16.mxu0 %v514
    %578 = vmatpush1.bf16.msra.mxu0 %v513
    %579 = vmatprep.subr.bf16.mxu0 %v516
    %580 = vmatpush1.bf16.msra.mxu0 %v515
    %581 = vmatprep.subr.bf16.mxu0 %v518
    %582 = vmatpush1.bf16.msra.mxu0 %v517
    %583 = vmatprep.subr.bf16.mxu0 %v520
    %584 = vmatpush1.bf16.msra.mxu0 %v519
    %585 = vmatprep.subr.bf16.mxu0 %v522
    %586 = vmatpush1.bf16.msra.mxu0 %v521
    %587 = vmatprep.mubr.bf16.mxu0 %v336
    %588 = vmatmul.mubr.bf16.gmra.mrb[0].mxu0 %v335
    %v589 = vpop.f32.mrb[0].mxu0
    %v590 = vadd.f32 %v388, %v589
    %v591 = vpop.f32.mrb[0].mxu0
    %v592 = vadd.f32 %v392, %v591
    %v593 = vpop.f32.mrb[0].mxu0
    %v594 = vadd.f32 %v388, %v593
    %v595 = vpop.f32.mrb[0].mxu0
    %v596 = vadd.f32 %v392, %v595
    %597 = vmatprep.mubr.bf16.mxu0 %v338
    %598 = vmatmul.mubr.bf16.gmra.mrb[0].mxu0 %v337
    %v599 = vpop.f32.mrb[0].mxu0
    %v600 = vadd.f32 %v388, %v599
    %v601 = vpop.f32.mrb[0].mxu0
    %v602 = vadd.f32 %v392, %v601
    %v603 = vpop.f32.mrb[0].mxu0
    %v604 = vadd.f32 %v388, %v603
    %v605 = vpop.f32.mrb[0].mxu0
    %v606 = vadd.f32 %v392, %v605
    %607 = vmatprep.mubr.bf16.mxu0 %v340
    %608 = vmatmul.mubr.bf16.gmra.mrb[0].mxu0 %v339
    %v609 = vpop.f32.mrb[0].mxu0
    %v610 = vadd.f32 %v388, %v609
    %v611 = vpop.f32.mrb[0].mxu0
    %v612 = vadd.f32 %v392, %v611
    %v613 = vpop.f32.mrb[0].mxu0
    %v614 = vadd.f32 %v388, %v613
    %v615 = vpop.f32.mrb[0].mxu0
    %v616 = vadd.f32 %v392, %v615
    %617 = vmatprep.mubr.bf16.mxu0 %v342
    %618 = vmatmul.mubr.bf16.gmra.mrb[0].mxu0 %v341
    %v619 = vpop.f32.mrb[0].mxu0
    %v620 = vadd.f32 %v388, %v619
    %v621 = vpop.f32.mrb[0].mxu0
    %v622 = vadd.f32 %v392, %v621
    %v623 = vpop.f32.mrb[0].mxu0
    %v624 = vadd.f32 %v388, %v623
    %v625 = vpop.f32.mrb[0].mxu0
    %v626 = vadd.f32 %v392, %v625
    %627 = vmatprep.mubr.bf16.mxu0 %v344
    %628 = vmatmul.mubr.bf16.gmra.mrb[0].mxu0 %v343
    %v629 = vpop.f32.mrb[0].mxu0
    %v630 = vadd.f32 %v388, %v629
    %v631 = vpop.f32.mrb[0].mxu0
    %v632 = vadd.f32 %v392, %v631
    %v633 = vpop.f32.mrb[0].mxu0
    %v634 = vadd.f32 %v388, %v633
    %v635 = vpop.f32.mrb[0].mxu0
    %v636 = vadd.f32 %v392, %v635
    %637 = vmatprep.mubr.bf16.mxu0 %v346
    %638 = vmatmul.mubr.bf16.gmra.mrb[0].mxu0 %v345
    %v639 = vpop.f32.mrb[0].mxu0
    %v640 = vadd.f32 %v388, %v639
    %v641 = vpop.f32.mrb[0].mxu0
    %v642 = vadd.f32 %v392, %v641
    %v643 = vpop.f32.mrb[0].mxu0
    %v644 = vadd.f32 %v388, %v643
    %v645 = vpop.f32.mrb[0].mxu0
    %v646 = vadd.f32 %v392, %v645
    %647 = vmatprep.mubr.bf16.mxu0 %v348
    %648 = vmatmul.mubr.bf16.gmra.mrb[0].mxu0 %v347
    %v649 = vpop.f32.mrb[0].mxu0
    %v650 = vadd.f32 %v388, %v649
    %v651 = vpop.f32.mrb[0].mxu0
    %v652 = vadd.f32 %v392, %v651
    %v653 = vpop.f32.mrb[0].mxu0
    %v654 = vadd.f32 %v388, %v653
    %v655 = vpop.f32.mrb[0].mxu0
    %v656 = vadd.f32 %v392, %v655
    %657 = vmatprep.mubr.bf16.mxu0 %v350
    %658 = vmatmul.mubr.bf16.gmra.mrb[0].mxu0 %v349
    %v659 = vpop.f32.mrb[0].mxu0
    %v660 = vadd.f32 %v388, %v659
    %v661 = vpop.f32.mrb[0].mxu0
    %v662 = vadd.f32 %v392, %v661
    %v663 = vpop.f32.mrb[0].mxu0
    %v664 = vadd.f32 %v388, %v663
    %v665 = vpop.f32.mrb[0].mxu0
    %v666 = vadd.f32 %v392, %v665
    %667 = vdwg.mxu0
    %vm668 = vcmp.gt.f32.partialorder %v590, 0.0
    %vm669 = vcmp.gt.f32.partialorder %v592, 0.0
    %vm670 = vcmp.gt.f32.partialorder %v594, 0.0
    %vm671 = vcmp.gt.f32.partialorder %v596, 0.0
    %vm672 = vcmp.gt.f32.partialorder %v600, 0.0
    %vm673 = vcmp.gt.f32.partialorder %v602, 0.0
    %vm674 = vcmp.gt.f32.partialorder %v604, 0.0
    %vm675 = vcmp.gt.f32.partialorder %v606, 0.0
    %vm676 = vcmp.gt.f32.partialorder %v610, 0.0
    %vm677 = vcmp.gt.f32.partialorder %v612, 0.0
    %vm678 = vcmp.gt.f32.partialorder %v614, 0.0
    %vm679 = vcmp.gt.f32.partialorder %v616, 0.0
    %vm680 = vcmp.gt.f32.partialorder %v620, 0.0
    %vm681 = vcmp.gt.f32.partialorder %v622, 0.0
    %vm682 = vcmp.gt.f32.partialorder %v624, 0.0
    %vm683 = vcmp.gt.f32.partialorder %v626, 0.0
    %vm684 = vcmp.gt.f32.partialorder %v630, 0.0
    %vm685 = vcmp.gt.f32.partialorder %v632, 0.0
    %vm686 = vcmp.gt.f32.partialorder %v634, 0.0
    %vm687 = vcmp.gt.f32.partialorder %v636, 0.0
    %vm688 = vcmp.gt.f32.partialorder %v640, 0.0
    %vm689 = vcmp.gt.f32.partialorder %v642, 0.0
    %vm690 = vcmp.gt.f32.partialorder %v644, 0.0
    %vm691 = vcmp.gt.f32.partialorder %v646, 0.0
    %vm692 = vcmp.gt.f32.partialorder %v650, 0.0
    %vm693 = vcmp.gt.f32.partialorder %v652, 0.0
    %vm694 = vcmp.gt.f32.partialorder %v654, 0.0
    %vm695 = vcmp.gt.f32.partialorder %v656, 0.0
    %vm696 = vcmp.gt.f32.partialorder %v660, 0.0
    %vm697 = vcmp.gt.f32.partialorder %v662, 0.0
    %vm698 = vcmp.gt.f32.partialorder %v664, 0.0
    %vm699 = vcmp.gt.f32.partialorder %v666, 0.0
    %v700 = vmul.f32 %v590, 0.01
    %v701 = vmul.f32 %v592, 0.01
    %v702 = vmul.f32 %v594, 0.01
    %v703 = vmul.f32 %v596, 0.01
    %v704 = vmul.f32 %v600, 0.01
    %v705 = vmul.f32 %v602, 0.01
    %v706 = vmul.f32 %v604, 0.01
    %v707 = vmul.f32 %v606, 0.01
    %v708 = vmul.f32 %v610, 0.01
    %v709 = vmul.f32 %v612, 0.01
    %v710 = vmul.f32 %v614, 0.01
    %v711 = vmul.f32 %v616, 0.01
    %v712 = vmul.f32 %v620, 0.01
    %v713 = vmul.f32 %v622, 0.01
    %v714 = vmul.f32 %v624, 0.01
    %v715 = vmul.f32 %v626, 0.01
    %v716 = vmul.f32 %v630, 0.01
    %v717 = vmul.f32 %v632, 0.01
    %v718 = vmul.f32 %v634, 0.01
    %v719 = vmul.f32 %v636, 0.01
    %v720 = vmul.f32 %v640, 0.01
    %v721 = vmul.f32 %v642, 0.01
    %v722 = vmul.f32 %v644, 0.01
    %v723 = vmul.f32 %v646, 0.01
    %v724 = vmul.f32 %v650, 0.01
    %v725 = vmul.f32 %v652, 0.01
    %v726 = vmul.f32 %v654, 0.01
    %v727 = vmul.f32 %v656, 0.01
    %v728 = vmul.f32 %v660, 0.01
    %v729 = vmul.f32 %v662, 0.01
    %v730 = vmul.f32 %v664, 0.01
    %v731 = vmul.f32 %v666, 0.01
    %v732 = vsel %vm668, %v590, %v700
    %v733 = vsel %vm669, %v592, %v701
    %v734 = vsel %vm670, %v594, %v702
    %v735 = vsel %vm671, %v596, %v703
    %v736 = vsel %vm672, %v600, %v704
    %v737 = vsel %vm673, %v602, %v705
    %v738 = vsel %vm674, %v604, %v706
    %v739 = vsel %vm675, %v606, %v707
    %v740 = vsel %vm676, %v610, %v708
    %v741 = vsel %vm677, %v612, %v709
    %v742 = vsel %vm678, %v614, %v710
    %v743 = vsel %vm679, %v616, %v711
    %v744 = vsel %vm680, %v620, %v712
    %v745 = vsel %vm681, %v622, %v713
    %v746 = vsel %vm682, %v624, %v714
    %v747 = vsel %vm683, %v626, %v715
    %v748 = vsel %vm684, %v630, %v716
    %v749 = vsel %vm685, %v632, %v717
    %v750 = vsel %vm686, %v634, %v718
    %v751 = vsel %vm687, %v636, %v719
    %v752 = vsel %vm688, %v640, %v720
    %v753 = vsel %vm689, %v642, %v721
    %v754 = vsel %vm690, %v644, %v722
    %v755 = vsel %vm691, %v646, %v723
    %v756 = vsel %vm692, %v650, %v724
    %v757 = vsel %vm693, %v652, %v725
    %v758 = vsel %vm694, %v654, %v726
    %v759 = vsel %vm695, %v656, %v727
    %v760 = vsel %vm696, %v660, %v728
    %v761 = vsel %vm697, %v662, %v729
    %v762 = vsel %vm698, %v664, %v730
    %v763 = vsel %vm699, %v666, %v731
    %v764 = vpack.c.bf16 %v734, %v732
    %v765 = vpack.c.bf16 %v735, %v733
    %v766 = vpack.c.bf16 %v738, %v736
    %v767 = vpack.c.bf16 %v739, %v737
    %v768 = vpack.c.bf16 %v742, %v740
    %v769 = vpack.c.bf16 %v743, %v741
    %v770 = vpack.c.bf16 %v746, %v744
    %v771 = vpack.c.bf16 %v747, %v745
    %v772 = vpack.c.bf16 %v750, %v748
    %v773 = vpack.c.bf16 %v751, %v749
    %v774 = vpack.c.bf16 %v754, %v752
    %v775 = vpack.c.bf16 %v755, %v753
    %v776 = vpack.c.bf16 %v758, %v756
    %v777 = vpack.c.bf16 %v759, %v757
    %v778 = vpack.c.bf16 %v762, %v760
    %v779 = vpack.c.bf16 %v763, %v761
    %v780 = vld [vmem:[%s5] sm:$0xf]
    %v781 = vld [vmem:[%s5 + $0x4] sm:$0xf]
    %v782 = vld [vmem:[%s5 + $0x8] sm:$0xf]
    %v783 = vld [vmem:[%s5 + $0xc] sm:$0xf]
    %v784 = vld [vmem:[%s5 + $0x10] sm:$0xf]
    %v785 = vld [vmem:[%s5 + $0x14] sm:$0xf]
    %v786 = vld [vmem:[%s5 + $0x18] sm:$0xf]
    %v787 = vld [vmem:[%s5 + $0x1c] sm:$0xf]
    %v788 = vld [vmem:[%s5 + $0x20] sm:$0xf]
    %v789 = vld [vmem:[%s5 + $0x24] sm:$0xf]
    %v790 = vld [vmem:[%s5 + $0x28] sm:$0xf]
    %v791 = vld [vmem:[%s5 + $0x2c] sm:$0xf]
    %v792 = vld [vmem:[%s5 + $0x30] sm:$0xf]
    %v793 = vld [vmem:[%s5 + $0x34] sm:$0xf]
    %v794 = vld [vmem:[%s5 + $0x38] sm:$0xf]
    %v795 = vld [vmem:[%s5 + $0x3c] sm:$0xf]
    %v796 = vld [vmem:[%s5 + $0x40] sm:$0xf]
    %v797 = vld [vmem:[%s5 + $0x44] sm:$0xf]
    %v798 = vld [vmem:[%s5 + $0x48] sm:$0xf]
    %v799 = vld [vmem:[%s5 + $0x4c] sm:$0xf]
    %v800 = vld [vmem:[%s5 + $0x50] sm:$0xf]
    %v801 = vld [vmem:[%s5 + $0x54] sm:$0xf]
    %v802 = vld [vmem:[%s5 + $0x58] sm:$0xf]
    %v803 = vld [vmem:[%s5 + $0x5c] sm:$0xf]
    %v804 = vld [vmem:[%s5 + $0x60] sm:$0xf]
    %v805 = vld [vmem:[%s5 + $0x64] sm:$0xf]
    %v806 = vld [vmem:[%s5 + $0x68] sm:$0xf]
    %v807 = vld [vmem:[%s5 + $0x6c] sm:$0xf]
    %v808 = vld [vmem:[%s5 + $0x70] sm:$0xf]
    %v809 = vld [vmem:[%s5 + $0x74] sm:$0xf]
    %v810 = vld [vmem:[%s5 + $0x78] sm:$0xf]
    %v811 = vld [vmem:[%s5 + $0x7c] sm:$0xf]
    %v812 = vld [vmem:[%s6] sm:$0x1]
    %v814 = vlaneseq
    %v815 = vshrl.u32 %v814, 7
    %v816 = vsub.s32 0, %v815
    %v817 = vrot.slane %v812, %v816
    %v851 = vunpack.c.l.b16 %v780
    %v852 = vunpack.c.l.b16 %v781
    %v853 = vunpack.c.l.b16 %v782
    %v854 = vunpack.c.l.b16 %v783
    %v855 = vunpack.c.l.b16 %v784
    %v856 = vunpack.c.l.b16 %v785
    %v857 = vunpack.c.l.b16 %v786
    %v858 = vunpack.c.l.b16 %v787
    %v859 = vunpack.c.l.b16 %v788
    %v860 = vunpack.c.l.b16 %v789
    %v861 = vunpack.c.l.b16 %v790
    %v862 = vunpack.c.l.b16 %v791
    %v863 = vunpack.c.l.b16 %v792
    %v864 = vunpack.c.l.b16 %v793
    %v865 = vunpack.c.l.b16 %v794
    %v866 = vunpack.c.l.b16 %v795
    %v867 = vunpack.c.l.b16 %v796
    %v868 = vunpack.c.l.b16 %v797
    %v869 = vunpack.c.l.b16 %v798
    %v870 = vunpack.c.l.b16 %v799
    %v871 = vunpack.c.l.b16 %v800
    %v872 = vunpack.c.l.b16 %v801
    %v873 = vunpack.c.l.b16 %v802
    %v874 = vunpack.c.l.b16 %v803
    %v875 = vunpack.c.l.b16 %v804
    %v876 = vunpack.c.l.b16 %v805
    %v877 = vunpack.c.l.b16 %v806
    %v878 = vunpack.c.l.b16 %v807
    %v879 = vunpack.c.l.b16 %v808
    %v880 = vunpack.c.l.b16 %v809
    %v881 = vunpack.c.l.b16 %v810
    %v882 = vunpack.c.l.b16 %v811
    %v883 = vpack.c.b16 %v852, %v851
    %v884 = vpack.c.b16 %v854, %v853
    %v885 = vpack.c.b16 %v856, %v855
    %v886 = vpack.c.b16 %v858, %v857
    %v887 = vpack.c.b16 %v860, %v859
    %v888 = vpack.c.b16 %v862, %v861
    %v889 = vpack.c.b16 %v864, %v863
    %v890 = vpack.c.b16 %v866, %v865
    %v891 = vpack.c.b16 %v868, %v867
    %v892 = vpack.c.b16 %v870, %v869
    %v893 = vpack.c.b16 %v872, %v871
    %v894 = vpack.c.b16 %v874, %v873
    %v895 = vpack.c.b16 %v876, %v875
    %v896 = vpack.c.b16 %v878, %v877
    %v897 = vpack.c.b16 %v880, %v879
    %v898 = vpack.c.b16 %v882, %v881
    %915 = vmatprep.subr.bf16.mxu0 0
    %916 = vmatpush1.bf16.msra.mxu0 %v883
    %917 = vmatprep.subr.bf16.mxu0 0
    %918 = vmatpush1.bf16.msra.mxu0 %v884
    %919 = vmatprep.subr.bf16.mxu0 0
    %920 = vmatpush1.bf16.msra.mxu0 %v885
    %921 = vmatprep.subr.bf16.mxu0 0
    %922 = vmatpush1.bf16.msra.mxu0 %v886
    %923 = vmatprep.subr.bf16.mxu0 0
    %924 = vmatpush1.bf16.msra.mxu0 %v887
    %925 = vmatprep.subr.bf16.mxu0 0
    %926 = vmatpush1.bf16.msra.mxu0 %v888
    %927 = vmatprep.subr.bf16.mxu0 0
    %928 = vmatpush1.bf16.msra.mxu0 %v889
    %929 = vmatprep.subr.bf16.mxu0 0
    %930 = vmatpush1.bf16.msra.mxu0 %v890
    %931 = vmatprep.subr.bf16.mxu0 0
    %932 = vmatpush1.bf16.msra.mxu0 %v891
    %933 = vmatprep.subr.bf16.mxu0 0
    %934 = vmatpush1.bf16.msra.mxu0 %v892
    %935 = vmatprep.subr.bf16.mxu0 0
    %936 = vmatpush1.bf16.msra.mxu0 %v893
    %937 = vmatprep.subr.bf16.mxu0 0
    %938 = vmatpush1.bf16.msra.mxu0 %v894
    %939 = vmatprep.subr.bf16.mxu0 0
    %940 = vmatpush1.bf16.msra.mxu0 %v895
    %941 = vmatprep.subr.bf16.mxu0 0
    %942 = vmatpush1.bf16.msra.mxu0 %v896
    %943 = vmatprep.subr.bf16.mxu0 0
    %944 = vmatpush1.bf16.msra.mxu0 %v897
    %945 = vmatprep.subr.bf16.mxu0 0
    %946 = vmatpush1.bf16.msra.mxu0 %v898
    %947 = vmatprep.mubr.bf16.mxu0 %v765
    %948 = vmatmul.mubr.bf16.gmra.mrb[0].mxu0 %v764
    %v949 = vpop.f32.mrb[0].mxu0
    %v950 = vadd.f32 %v817, %v949
    %v951 = vpop.f32.mrb[0].mxu0
    %v952 = vpop.f32.mrb[0].mxu0
    %v953 = vadd.f32 %v817, %v952
    %v954 = vpop.f32.mrb[0].mxu0
    %955 = vmatprep.mubr.bf16.mxu0 %v767
    %956 = vmatmul.mubr.bf16.gmra.mrb[0].mxu0 %v766
    %v957 = vpop.f32.mrb[0].mxu0
    %v958 = vadd.f32 %v817, %v957
    %v959 = vpop.f32.mrb[0].mxu0
    %v960 = vpop.f32.mrb[0].mxu0
    %v961 = vadd.f32 %v817, %v960
    %v962 = vpop.f32.mrb[0].mxu0
    %963 = vmatprep.mubr.bf16.mxu0 %v769
    %964 = vmatmul.mubr.bf16.gmra.mrb[0].mxu0 %v768
    %v965 = vpop.f32.mrb[0].mxu0
    %v966 = vadd.f32 %v817, %v965
    %v967 = vpop.f32.mrb[0].mxu0
    %v968 = vpop.f32.mrb[0].mxu0
    %v969 = vadd.f32 %v817, %v968
    %v970 = vpop.f32.mrb[0].mxu0
    %971 = vmatprep.mubr.bf16.mxu0 %v771
    %972 = vmatmul.mubr.bf16.gmra.mrb[0].mxu0 %v770
    %v973 = vpop.f32.mrb[0].mxu0
    %v974 = vadd.f32 %v817, %v973
    %v975 = vpop.f32.mrb[0].mxu0
    %v976 = vpop.f32.mrb[0].mxu0
    %v977 = vadd.f32 %v817, %v976
    %v978 = vpop.f32.mrb[0].mxu0
    %979 = vmatprep.mubr.bf16.mxu0 %v773
    %980 = vmatmul.mubr.bf16.gmra.mrb[0].mxu0 %v772
    %v981 = vpop.f32.mrb[0].mxu0
    %v982 = vadd.f32 %v817, %v981
    %v983 = vpop.f32.mrb[0].mxu0
    %v984 = vpop.f32.mrb[0].mxu0
    %v985 = vadd.f32 %v817, %v984
    %v986 = vpop.f32.mrb[0].mxu0
    %987 = vmatprep.mubr.bf16.mxu0 %v775
    %988 = vmatmul.mubr.bf16.gmra.mrb[0].mxu0 %v774
    %v989 = vpop.f32.mrb[0].mxu0
    %v990 = vadd.f32 %v817, %v989
    %v991 = vpop.f32.mrb[0].mxu0
    %v992 = vpop.f32.mrb[0].mxu0
    %v993 = vadd.f32 %v817, %v992
    %v994 = vpop.f32.mrb[0].mxu0
    %995 = vmatprep.mubr.bf16.mxu0 %v777
    %996 = vmatmul.mubr.bf16.gmra.mrb[0].mxu0 %v776
    %v997 = vpop.f32.mrb[0].mxu0
    %v998 = vadd.f32 %v817, %v997
    %v999 = vpop.f32.mrb[0].mxu0
    %v1000 = vpop.f32.mrb[0].mxu0
    %v1001 = vadd.f32 %v817, %v1000
    %v1002 = vpop.f32.mrb[0].mxu0
    %1003 = vmatprep.mubr.bf16.mxu0 %v779
    %1004 = vmatmul.mubr.bf16.gmra.mrb[0].mxu0 %v778
    %v1005 = vpop.f32.mrb[0].mxu0
    %v1006 = vadd.f32 %v817, %v1005
    %v1007 = vpop.f32.mrb[0].mxu0
    %v1008 = vpop.f32.mrb[0].mxu0
    %v1009 = vadd.f32 %v817, %v1008
    %v1010 = vpop.f32.mrb[0].mxu0
    %1011 = vdwg.mxu0
    %vm1012 = vcmask 7168
    %1013 = vst.msk [vmem:[%s7] sm:$0xff] %vm1012, %v950
    %1014 = vst.msk [vmem:[%s7 + $0x8] sm:$0xff] %vm1012, %v953
    %1015 = vst.msk [vmem:[%s7 + $0x10] sm:$0xff] %vm1012, %v958
    %1016 = vst.msk [vmem:[%s7 + $0x18] sm:$0xff] %vm1012, %v961
    %1017 = vst.msk [vmem:[%s7 + $0x20] sm:$0xff] %vm1012, %v966
    %1018 = vst.msk [vmem:[%s7 + $0x28] sm:$0xff] %vm1012, %v969
    %1019 = vst.msk [vmem:[%s7 + $0x30] sm:$0xff] %vm1012, %v974
    %1020 = vst.msk [vmem:[%s7 + $0x38] sm:$0xff] %vm1012, %v977
    %1021 = vst.msk [vmem:[%s7 + $0x40] sm:$0xff] %vm1012, %v982
    %1022 = vst.msk [vmem:[%s7 + $0x48] sm:$0xff] %vm1012, %v985
    %1023 = vst.msk [vmem:[%s7 + $0x50] sm:$0xff] %vm1012, %v990
    %1024 = vst.msk [vmem:[%s7 + $0x58] sm:$0xff] %vm1012, %v993
    %1025 = vst.msk [vmem:[%s7 + $0x60] sm:$0xff] %vm1012, %v998
    %1026 = vst.msk [vmem:[%s7 + $0x68] sm:$0xff] %vm1012, %v1001
    %1027 = vst.msk [vmem:[%s7 + $0x70] sm:$0xff] %vm1012, %v1006
    %1028 = vst.msk [vmem:[%s7 + $0x78] sm:$0xff] %vm1012, %v1009
    // Predicated region
    $region34: #{_linear_head_call.1} parent=1 // pred_check
      _
    $region35: #{_linear_head_call.1} parent=1 // pred_check_branch
      %1030 = sbr.rel (0) target = $region37
    $region36: #{_linear_head_call.1} parent=1 // pred_region
      _
    $region37: #{_linear_head_call.1} parent=1 // pred_fallthru
      _
    // Predicated region
    $region38: #{_linear_head_call.1} parent=1 // pred_check
      _
    $region39: #{_linear_head_call.1} parent=1 // pred_check_branch
      %1032 = sbr.rel (0) target = $region41
    $region40: #{_linear_head_call.1} parent=1 // pred_region
      _
    $region41: #{_linear_head_call.1} parent=1 // pred_fallthru
      _
    %1033 = vsyncpa [#allocation3], 1

</llo_original>
